<compile_context>
chip_gen: v7x
topology: tpu7x:2x2x1
jax: 0.10.0
libtpu: 0.0.40
codegen_flags: <defaults>
</compile_context>

<pallas_src>
import jax
import jax.numpy as jnp
from jax.experimental import pallas as pl
from jax.experimental.pallas import tpu as pltpu

# Fixed interval bounds from the module's __init__.
_A = (0.5, 15.0, 0.3)
_B = (2.0, 400.0, 30.0)
_SCALE = tuple(float(b) - float(a) for a, b in zip(_A, _B))  # (1.5, 385.0, 29.7)

_LANES = 384  # lcm(3, 128): lane-dense layout, lane % 3 == parameter index


def _interval_norm_kernel(x_ref, o_ref):
    x = x_ref[...]
    # sigmoid(x) = 0.5 * tanh(0.5 * x) + 0.5  -> single EUP transcendental op.
    sig = 0.5 * jnp.tanh(0.5 * x) + 0.5
    # Per-lane affine parameters built from scalar immediates (no DMA'd inputs).
    lane = jax.lax.broadcasted_iota(jnp.int32, (1, x.shape[1]), 1) % 3
    scale = jnp.where(lane == 0, _SCALE[0],
                      jnp.where(lane == 1, _SCALE[1], _SCALE[2])).astype(x.dtype)
    offset = jnp.where(lane == 0, _A[0],
                       jnp.where(lane == 1, _A[1], _A[2])).astype(x.dtype)
    o_ref[...] = sig * scale + offset


def interval_normalization(x: jax.Array, *, block_rows: int = 1024) -> jax.Array:
    """x: (B, 3) float32. Returns sigmoid(x) * (b - a) + a with fixed a, b."""
    B, F = x.shape
    assert F == 3, "IntervalNormalizationLayer expects 3 parameters on the last dim"
    assert block_rows % 8 == 0, "block_rows must be a multiple of 8 (sublane tiling)"

    n = B * F
    rows_needed = -(-n // _LANES)  # ceil(n / 384)
    if rows_needed <= block_rows:
        # Single block that equals the full array (always a legal block shape).
        block_rows = rows_needed
        rows_padded = rows_needed
    else:
        rows_padded = -(-rows_needed // block_rows) * block_rows

    total = rows_padded * _LANES
    # Pad the flat buffer; padded tail (zeros) is computed and sliced off below.
    flat = jnp.zeros((total,), dtype=x.dtype).at[:n].set(x.reshape(-1))
    x2d = flat.reshape(rows_padded, _LANES)

    out2d = pl.pallas_call(
        _interval_norm_kernel,
        out_shape=jax.ShapeDtypeStruct((rows_padded, _LANES), x.dtype),
        grid_spec=pltpu.PrefetchScalarGridSpec(
            num_scalar_prefetch=0,
            grid=(rows_padded // block_rows,),
            in_specs=[pl.BlockSpec((block_rows, _LANES), lambda i: (i, 0))],
            out_specs=pl.BlockSpec((block_rows, _LANES), lambda i: (i, 0)),
        ),
        compiler_params=pltpu.CompilerParams(
            dimension_semantics=("parallel",),
        ),
    )(x2d)

    return out2d.reshape(-1)[:n].reshape(B, F)


if __name__ == "__main__":
    a = jnp.array(_A, dtype=jnp.float32)
    b = jnp.array(_B, dtype=jnp.float32)

    key = jax.random.PRNGKey(0)

    # Small deterministic input: batch=16, 3 parameters (ED volume, ES volume, EF).
    x = jax.random.normal(key, (16, 3), dtype=jnp.float32)
    out = jax.block_until_ready(interval_normalization(x))
    ref = jax.nn.sigmoid(x) * (b - a) + a
    assert out.shape == x.shape
    assert jnp.allclose(out, ref, atol=1e-4, rtol=1e-5), "mismatch vs reference (B=16)"

    # Ragged batch (not a multiple of 128 rows of the lane-dense layout) to
    # exercise the pad-and-slice path.
    x2 = jax.random.normal(jax.random.PRNGKey(1), (1000, 3), dtype=jnp.float32)
    out2 = jax.block_until_ready(interval_normalization(x2))
    ref2 = jax.nn.sigmoid(x2) * (b - a) + a
    assert out2.shape == x2.shape
    assert jnp.allclose(out2, ref2, atol=1e-4, rtol=1e-5), "mismatch vs reference (B=1000)"

    print("KERNEL_OK")
</pallas_src>

<mosaic_0001>
module attributes {stable_mosaic.version = 11 : i64} {
  func.func @_interval_norm_kernel(%arg0: i32, %arg1: memref<1x384xf32, #tpu.memory_space<vmem>>, %arg2: memref<1x384xf32, #tpu.memory_space<vmem>>) attributes {dimension_semantics = [#tpu.dimension_semantics<parallel>], iteration_bounds = array<i64: 1>, scalar_prefetch = 0 : i64, scratch_operands = 0 : i64, tpu.core_type = #tpu.core_type<tc>, window_params = [{transform_indices = @transform_0, window_bounds = array<i64: 1, 384>}, {transform_indices = @transform_1, window_bounds = array<i64: 1, 384>}]} {
    %c0 = arith.constant 0 : index
    %c0_0 = arith.constant 0 : index
    %0 = vector.load %arg1[%c0, %c0_0] : memref<1x384xf32, #tpu.memory_space<vmem>>, vector<1x384xf32>
    %cst = arith.constant 5.000000e-01 : f32
    %1 = vector.broadcast %cst : f32 to vector<1x384xf32>
    %2 = arith.mulf %1, %0 : vector<1x384xf32>
    %3 = math.tanh %2 : vector<1x384xf32>
    %cst_1 = arith.constant 5.000000e-01 : f32
    %4 = vector.broadcast %cst_1 : f32 to vector<1x384xf32>
    %5 = arith.mulf %4, %3 : vector<1x384xf32>
    %cst_2 = arith.constant 5.000000e-01 : f32
    %6 = vector.broadcast %cst_2 : f32 to vector<1x384xf32>
    %7 = arith.addf %5, %6 : vector<1x384xf32>
    %8 = tpu.iota {dimensions = array<i32: 1>} : vector<1x384xi32>
    %c3_i32 = arith.constant 3 : i32
    %c0_i32 = arith.constant 0 : i32
    %9 = arith.cmpi eq, %c3_i32, %c0_i32 : i32
    %c1_i32 = arith.constant 1 : i32
    %10 = arith.select %9, %c1_i32, %c3_i32 : i32
    %11 = vector.broadcast %10 : i32 to vector<1x384xi32>
    %12 = arith.remsi %8, %11 : vector<1x384xi32>
    %c0_i32_3 = arith.constant 0 : i32
    %13 = vector.broadcast %c0_i32_3 : i32 to vector<1x384xi32>
    %14 = arith.cmpi ne, %12, %13 : vector<1x384xi32>
    %c0_i32_4 = arith.constant 0 : i32
    %15 = vector.broadcast %c0_i32_4 : i32 to vector<1x384xi32>
    %16 = arith.cmpi slt, %12, %15 : vector<1x384xi32>
    %c0_i32_5 = arith.constant 0 : i32
    %17 = arith.cmpi slt, %10, %c0_i32_5 : i32
    %18 = vector.broadcast %17 : i1 to vector<1x384xi1>
    %19 = vector.broadcast %18 : vector<1x384xi1> to vector<1x384xi1>
    %20 = arith.xori %16, %19 : vector<1x384xi1>
    %21 = arith.andi %20, %14 : vector<1x384xi1>
    %22 = vector.broadcast %10 : i32 to vector<1x384xi32>
    %23 = arith.addi %12, %22 : vector<1x384xi32>
    %24 = arith.select %21, %23, %12 : vector<1x384xi1>, vector<1x384xi32>
    %c0_i32_6 = arith.constant 0 : i32
    %25 = vector.broadcast %c0_i32_6 : i32 to vector<1x384xi32>
    %26 = arith.cmpi eq, %24, %25 : vector<1x384xi32>
    %c1_i32_7 = arith.constant 1 : i32
    %27 = vector.broadcast %c1_i32_7 : i32 to vector<1x384xi32>
    %28 = arith.cmpi eq, %24, %27 : vector<1x384xi32>
    %cst_8 = arith.constant 3.850000e+02 : f32
    %cst_9 = arith.constant 2.970000e+01 : f32
    %29 = vector.broadcast %cst_8 : f32 to vector<1x384xf32>
    %30 = vector.broadcast %cst_9 : f32 to vector<1x384xf32>
    %31 = arith.select %28, %29, %30 : vector<1x384xi1>, vector<1x384xf32>
    %cst_10 = arith.constant 1.500000e+00 : f32
    %32 = vector.broadcast %cst_10 : f32 to vector<1x384xf32>
    %33 = arith.select %26, %32, %31 : vector<1x384xi1>, vector<1x384xf32>
    %c0_i32_11 = arith.constant 0 : i32
    %34 = vector.broadcast %c0_i32_11 : i32 to vector<1x384xi32>
    %35 = arith.cmpi eq, %24, %34 : vector<1x384xi32>
    %c1_i32_12 = arith.constant 1 : i32
    %36 = vector.broadcast %c1_i32_12 : i32 to vector<1x384xi32>
    %37 = arith.cmpi eq, %24, %36 : vector<1x384xi32>
    %cst_13 = arith.constant 1.500000e+01 : f32
    %cst_14 = arith.constant 3.000000e-01 : f32
    %38 = vector.broadcast %cst_13 : f32 to vector<1x384xf32>
    %39 = vector.broadcast %cst_14 : f32 to vector<1x384xf32>
    %40 = arith.select %37, %38, %39 : vector<1x384xi1>, vector<1x384xf32>
    %cst_15 = arith.constant 5.000000e-01 : f32
    %41 = vector.broadcast %cst_15 : f32 to vector<1x384xf32>
    %42 = arith.select %35, %41, %40 : vector<1x384xi1>, vector<1x384xf32>
    %43 = arith.mulf %7, %33 : vector<1x384xf32>
    %44 = arith.addf %43, %42 : vector<1x384xf32>
    %c0_16 = arith.constant 0 : index
    %c0_17 = arith.constant 0 : index
    %45 = vector.load %arg2[%c0_16, %c0_17] : memref<1x384xf32, #tpu.memory_space<vmem>>, vector<1x384xf32>
    tpu.vector_store %arg2[%c0_16, %c0_17], %44 {strides = array<i32>} : memref<1x384xf32, #tpu.memory_space<vmem>>, vector<1x384xf32>,
    return
  }
  func.func @transform_0(%arg0: i32) -> (i32, i32) {
    %c0_i32 = arith.constant 0 : i32
    %c0_i32_0 = arith.constant 0 : i32
    return %arg0, %c0_i32 : i32, i32
  }
  func.func @transform_1(%arg0: i32) -> (i32, i32) {
    %c0_i32 = arith.constant 0 : i32
    %c0_i32_0 = arith.constant 0 : i32
    return %arg0, %c0_i32 : i32, i32
  }
}

</mosaic_0001>

<llo_original>
// kernel: tpu_custom_call.1
$region0: #{tpu_custom_call.1}
  #allocation0 [shape = 'u32[]', space=smem, size = 0x4, offset = 0x4, fixed_abs, tag = 'smem constant byte address 0x4 - core index']
  #allocation1 [shape = 'u32[144,128]{1,0:T(1,128)}', space=vmem, size = 0x12000, scoped, tag = 'internal scratch']
  %s0 = inlined_call_operand.hbm [shape: f32[1,384], index: 0, kind: input, shape index: {}]
  %s1 = inlined_call_operand.hbm [shape: f32[1,384], index: 1, kind: output, shape index: {}]
  %s2 = sld [smem:[#allocation0]]
  $region18: #{tpu_custom_call.1} parent=0
    _
  %s4 = ssub.s32 1, %s2
  %s5 = scalar_select 0, %s4, %s2
  $region1: #{tpu_custom_call.1} parent=0
    #allocation2 [shape = 'u8[1536]{0}', space=vmem, size = 0x800, scoped, tag = 'input window, operand 0, single buffered']
    #allocation3 [shape = 's32[1]{0}', space=sflag, size = 0x4, scoped, tag = 'scoped memory for tpu_custom_call.1']
    #allocation4 [shape = 's32[1]{0}', space=sflag, size = 0x4, scoped, tag = 'scoped memory for tpu_custom_call.1']
    #allocation5 [shape = 'u8[1536]{0}', space=vmem, size = 0x800, scoped, tag = 'output window, operand 0, single buffered']
    %6 = vsyncpa [#allocation3], 0
    %7 = vsyncpa [#allocation4], 0
    // Predicated region
    $region2: #{tpu_custom_call.1} parent=1 // pred_check
      _
    $region3: #{tpu_custom_call.1} parent=1 // pred_check_branch
      %9 = sbr.rel (0) target = $region5
    $region4: #{tpu_custom_call.1} parent=1 // pred_region
      %s11 = ssub.s32 48, 48
      %12 = vsyncadd [#allocation3], %s11
      %s14 = sshll.u32 [#allocation2], 4
      %s15 = int_to_ptr.vmem [resolvable:$true] %s14
      %17 = dma.hbm_to_vmem [thread:$0]  %s0, 48, %s15, [#allocation3]
    $region5: #{tpu_custom_call.1} parent=1 // pred_fallthru
      _
    // Predicated region
    $region6: #{tpu_custom_call.1} parent=1 // pred_check
      _
    $region7: #{tpu_custom_call.1} parent=1 // pred_check_branch
      %19 = sbr.rel (0) target = $region9
    $region8: #{tpu_custom_call.1} parent=1 // pred_region
      %20 = dma.done [#allocation3], 48
    $region9: #{tpu_custom_call.1} parent=1 // pred_fallthru
      _
    %v21 = vld [vmem:[#allocation2] sm:$0x7]
    %v22 = vmul.f32 %v21, 0.5
    %v23 = vtanh.pop %v22
    %v24 = vmul.f32 %v23, 0.5
    %v25 = vadd.f32 %v24, 0.5
    %v26 = vlaneseq
    %v27 = vand.u32 %v26, 127
    %v28 = vadd.s32 %v27, 128
    %v29 = vadd.s32 %v27, 256
    %vm30 = vcmp.lt.s32.totalorder %v27, 0
    %v31 = vsub.s32 0, %v27
    %v32 = vsel %vm30, %v31, %v27
    %v33 = vmul.u32.u64.compose %v32, 2863311531
    %v34 = vextract.low.u32 %v33
    %v35 = vextract.high.u32 %v33
    %v36 = vshrl.u32 %v35, 1
    %v37 = vmul.u32 %v36, 3
    %v38 = vsub.s32 %v32, %v37
    %v39 = vsub.s32 0, %v38
    %v40 = vsel %vm30, %v39, %v38
    %vm41 = vcmp.lt.s32.totalorder %v28, 0
    %v42 = vsub.s32 0, %v28
    %v43 = vsel %vm41, %v42, %v28
    %v44 = vmul.u32.u64.compose %v43, 2863311531
    %v45 = vextract.low.u32 %v44
    %v46 = vextract.high.u32 %v44
    %v47 = vshrl.u32 %v46, 1
    %v48 = vmul.u32 %v47, 3
    %v49 = vsub.s32 %v43, %v48
    %v50 = vsub.s32 0, %v49
    %v51 = vsel %vm41, %v50, %v49
    %vm52 = vcmp.lt.s32.totalorder %v29, 0
    %v53 = vsub.s32 0, %v29
    %v54 = vsel %vm52, %v53, %v29
    %v55 = vmul.u32.u64.compose %v54, 2863311531
    %v56 = vextract.low.u32 %v55
    %v57 = vextract.high.u32 %v55
    %v58 = vshrl.u32 %v57, 1
    %v59 = vmul.u32 %v58, 3
    %v60 = vsub.s32 %v54, %v59
    %v61 = vsub.s32 0, %v60
    %v62 = vsel %vm52, %v61, %v60
    %vm63 = vcmp.ne.s32.totalorder %v40, 0
    %vm64 = vcmp.ne.s32.totalorder %v51, 0
    %vm65 = vcmp.ne.s32.totalorder %v62, 0
    %vm66 = vcmp.lt.s32.totalorder %v40, 0
    %vm67 = vcmp.lt.s32.totalorder %v51, 0
    %vm68 = vcmp.lt.s32.totalorder %v62, 0
    %vm69 = vmand %vm66, %vm63
    %vm70 = vmand %vm67, %vm64
    %vm71 = vmand %vm68, %vm65
    %v72 = vadd.s32 %v40, 3
    %v73 = vadd.s32 %v51, 3
    %v74 = vadd.s32 %v62, 3
    %v75 = vsel %vm69, %v72, %v40
    %v76 = vsel %vm70, %v73, %v51
    %v77 = vsel %vm71, %v74, %v62
    %vm78 = vcmp.eq.s32.totalorder %v75, 0
    %vm79 = vcmp.eq.s32.totalorder %v76, 0
    %vm80 = vcmp.eq.s32.totalorder %v77, 0
    %vm81 = vcmp.eq.s32.totalorder %v75, 1
    %vm82 = vcmp.eq.s32.totalorder %v76, 1
    %vm83 = vcmp.eq.s32.totalorder %v77, 1
    %v84 = vsel %vm81, 385.0, 29.7
    %v85 = vsel %vm82, 385.0, 29.7
    %v86 = vsel %vm83, 385.0, 29.7
    %v87 = vsel %vm78, 1.5, %v84
    %v88 = vsel %vm79, 1.5, %v85
    %v89 = vsel %vm80, 1.5, %v86
    %v90 = vsel %vm81, 15.0, 0.3
    %v91 = vsel %vm82, 15.0, 0.3
    %v92 = vsel %vm83, 15.0, 0.3
    %v93 = vsel %vm78, 0.5, %v90
    %v94 = vsel %vm79, 0.5, %v91
    %v95 = vsel %vm80, 0.5, %v92
    %v99 = vcombine.low %v87, %v88
    %v101 = vunpack.c.l.s4 1966171168
    %v102 = vunpack.c.0.s8 %v101
    %v103 = vlaneseq
    %v104 = vshrl.u32 %v103, 7
    %v105 = vsub.s32 %v102, %v104
    %v106 = vrot.slane %v99, %v105
    %v108 = vunpack.c.l.s4 1966171168
    %v109 = vunpack.c.0.s8 %v108
    %v110 = vlaneseq
    %v111 = vshrl.u32 %v110, 7
    %v112 = vsub.s32 %v109, %v111
    %v113 = vrot.slane %v89, %v112
    %v114 = vcombine.low %v106, %v113
    %v116 = vunpack.c.l.s4 1966171168
    %v117 = vunpack.c.0.s8 %v116
    %v118 = vlaneseq
    %v119 = vshrl.u32 %v118, 7
    %v120 = vsub.s32 %v117, %v119
    %v121 = vrot.slane %v114, %v120
    %v123 = vmul.f32 %v25, %v121
    %v127 = vcombine.low %v93, %v94
    %v129 = vunpack.c.l.s4 1966171168
    %v130 = vunpack.c.0.s8 %v129
    %v131 = vlaneseq
    %v132 = vshrl.u32 %v131, 7
    %v133 = vsub.s32 %v130, %v132
    %v134 = vrot.slane %v127, %v133
    %v136 = vunpack.c.l.s4 1966171168
    %v137 = vunpack.c.0.s8 %v136
    %v138 = vlaneseq
    %v139 = vshrl.u32 %v138, 7
    %v140 = vsub.s32 %v137, %v139
    %v141 = vrot.slane %v95, %v140
    %v142 = vcombine.low %v134, %v141
    %v144 = vunpack.c.l.s4 1966171168
    %v145 = vunpack.c.0.s8 %v144
    %v146 = vlaneseq
    %v147 = vshrl.u32 %v146, 7
    %v148 = vsub.s32 %v145, %v147
    %v149 = vrot.slane %v142, %v148
    %v151 = vadd.f32 %v123, %v149
    %v152 = vlaneseq
    %vm153 = vcmp.ge.s32.totalorder %v152, 0
    %vm154 = vcmp.lt.s32.totalorder %v152, 384
    %vm155 = vmand %vm153, %vm154
    %156 = vst.msk [vmem:[#allocation5] sm:$0x7] %vm155, %v151
    // Predicated region
    $region10: #{tpu_custom_call.1} parent=1 // pred_check
      _
    $region11: #{tpu_custom_call.1} parent=1 // pred_check_branch
      %158 = sbr.rel (0) target = $region13
    $region12: #{tpu_custom_call.1} parent=1 // pred_region
      %s160 = ssub.s32 48, 48
      %161 = vsyncadd [#allocation4], %s160
      %s163 = sshll.u32 [#allocation5], 4
      %s164 = int_to_ptr.vmem [resolvable:$true] %s163
      %166 = dma.vmem_to_hbm [thread:$0]  %s164, 48, %s1, [#allocation4]
    $region13: #{tpu_custom_call.1} parent=1 // pred_fallthru
      _
    // Predicated region
    $region14: #{tpu_custom_call.1} parent=1 // pred_check
      _
    $region15: #{tpu_custom_call.1} parent=1 // pred_check_branch
      %168 = sbr.rel (0) target = $region17
    $region16: #{tpu_custom_call.1} parent=1 // pred_region
      %169 = dma.done [#allocation4], 48
    $region17: #{tpu_custom_call.1} parent=1 // pred_fallthru
      _
    %170 = vsyncpa [#allocation3], 1
    %171 = vsyncpa [#allocation4], 1

</llo_original>
